<compile_context>
chip_gen: v5e
topology: v5e:2x2
jax: 0.10.0
libtpu: 0.0.40
codegen_flags: <defaults>
</compile_context>

<pallas_src>
import math

import jax
import jax.numpy as jnp
from jax.experimental import pallas as pl
from jax.experimental.pallas import tpu as pltpu


def _round_up(v, m):
    return ((v + m - 1) // m) * m


def _choose_tile(dim, preferred, align):
    """Pick a block size for `dim`.

    Prefers (a) the full dim when it fits in `preferred` (no padding, legal as
    a full-extent block even if unaligned), else (b) the largest
    `align`-multiple <= preferred that divides `dim` (no padding), else
    (c) the largest `align`-multiple <= preferred, padding `dim` up.
    Returns (tile, padded_dim).
    """
    if dim <= preferred:
        return dim, dim
    t = (preferred // align) * align
    while t >= align:
        if dim % t == 0:
            return t, dim
        t -= align
    t = (preferred // align) * align
    return t, _round_up(dim, t)


def _addmm_kernel(x_ref, w_ref, b_ref, o_ref, acc_ref):
    # (tile_m, tile_k) @ (tile_k, tile_n) on the MXU, f32 accumulation in a
    # resident VMEM scratch; bias-add epilogue on the last K step.
    k = pl.program_id(2)

    @pl.when(k == 0)
    def _():
        acc_ref[...] = jnp.zeros_like(acc_ref)

    acc_ref[...] += jnp.dot(x_ref[...], w_ref[...],
                            preferred_element_type=jnp.float32)

    @pl.when(k == pl.num_programs(2) - 1)
    def _():
        o_ref[...] = (acc_ref[...]
                      + b_ref[...].astype(jnp.float32)).astype(o_ref.dtype)


def conv_randlora_forward(x, weight, bias, basis_b, basis_a,
                          randlora_lambda, randlora_gamma,
                          lora_alpha, r, *,
                          tile_m=None, tile_n=None, tile_k=None,
                          compute_dtype=jnp.bfloat16):
    """Unmerged forward pass of ConvRandLoRA (r > 0, not merged).

    compute_dtype=jnp.bfloat16 (default) feeds bf16 operands to the MXU
    (native rate on v5e/v6e/v7x) with f32 accumulation; pass None or
    jnp.float32 for exact f32 operands.
    """
    d_in, d_out = weight.shape            # (ctor out_features, ctor in_features = nf)
    n = basis_b.shape[0]
    max_dim, min_dim = max(d_in, d_out), min(d_in, d_out)
    scaling = lora_alpha / r / math.sqrt(n)

    # ---- merge_basis + effective-weight construction (plain-JAX glue) ----
    # LoadParams.forward: b[:, :, None] * basis_a * a[:, None, :]
    lora_a = (randlora_lambda[:, :, None]
              * basis_a[:n, :, :min_dim]
              * randlora_gamma[:, None, :])                      # (n, r, min_dim)
    lora_b = jnp.transpose(basis_b[:n, :max_dim, :], (1, 0, 2))  # (max_dim, n, r)
    lora_b = lora_b.reshape(max_dim, n * r)                      # (max_dim, n*r)
    lora_a = lora_a.reshape(n * r, min_dim)                      # (n*r, min_dim)
    delta = jnp.dot(lora_b, lora_a,
                    preferred_element_type=jnp.float32)          # (max_dim, min_dim)
    # Row-major reshape == torch's .view(weight.shape) for both shape regimes.
    w_eff = (weight.astype(jnp.float32)
             + delta.reshape(weight.shape) * jnp.float32(scaling))

    size_out = x.shape[:-1] + (d_out,)
    x2 = x.reshape(-1, d_in)
    M = x2.shape[0]
    out_dtype = x.dtype

    # ---- tile selection ----
    # tile_m: up to 512 rows to amortize per-step overhead and cut weight
    # re-streaming (weight is re-read once per M tile).  Padding x rows is
    # cheap, so M just rounds up.
    if tile_m is None:
        tile_m = min(512, _round_up(M, 8))
    M_p = _round_up(M, tile_m)
    num_m_tiles = M_p // tile_m

    # tile_k: 128-multiple divisor of d_in (<= 512) when possible, so the
    # weight is never padded along K; full d_in for narrow layers.
    if tile_k is None:
        tile_k, K_p = _choose_tile(d_in, 512, 128)
    else:
        K_p = _round_up(d_in, tile_k)
    num_k_tiles = K_p // tile_k

    # tile_n: 128-multiple divisor of d_out (<= 512) when possible so output
    # stores are lane-dense and the weight needs no padded HBM copy.  When
    # there is only one M tile, shrink tile_n so the parallel grid exposes
    # >= 2 tiles (keeps both v7x TensorCores busy).
    if tile_n is None:
        pref_n = 512
        if num_m_tiles == 1 and d_out >= 256:
            pref_n = min(pref_n, _round_up(d_out // 2, 128))
        tile_n, N_p = _choose_tile(d_out, pref_n, 128)
    else:
        N_p = _round_up(d_out, tile_n)
    num_n_tiles = N_p // tile_n

    # ---- pad only where unavoidable (normally just x rows) ----
    if M_p != M or K_p != d_in:
        x2 = jnp.pad(x2, ((0, M_p - M), (0, K_p - d_in)))
    bias2 = bias.astype(jnp.float32).reshape(1, d_out)
    if K_p != d_in or N_p != d_out:
        w_eff = jnp.pad(w_eff, ((0, K_p - d_in), (0, N_p - d_out)))
    if N_p != d_out:
        bias2 = jnp.pad(bias2, ((0, 0), (0, N_p - d_out)))

    # bf16 MXU operands (all generations); w_eff was built in f32 above so the
    # small LoRA contribution is not double-rounded.
    if compute_dtype is not None:
        x2 = x2.astype(compute_dtype)
        w_eff = w_eff.astype(compute_dtype)

    x_itm = x2.dtype.itemsize
    w_itm = w_eff.dtype.itemsize
    out_itm = jnp.dtype(out_dtype).itemsize

    # ---- scoped VMEM limit from the actual tile footprint ----
    # double-buffered x / w / bias / out tiles + resident f32 accumulator.
    vmem_needed = (2 * (tile_m * tile_k * x_itm
                        + tile_k * tile_n * w_itm
                        + tile_n * 4
                        + tile_m * tile_n * out_itm)
                   + tile_m * tile_n * 4)
    vmem_limit = int(min(64 * 1024 * 1024,
                         max(2 * vmem_needed + (2 << 20), 8 * 1024 * 1024)))

    cost = pl.CostEstimate(
        flops=2 * M_p * K_p * N_p,
        transcendentals=0,
        bytes_accessed=(x2.size * x_itm * num_n_tiles          # x re-streamed per N tile
                        + w_eff.size * w_itm * num_m_tiles     # weight re-streamed per M tile
                        + bias2.size * 4 * num_m_tiles
                        + M_p * N_p * out_itm))

    out = pl.pallas_call(
        _addmm_kernel,
        out_shape=jax.ShapeDtypeStruct((M_p, N_p), out_dtype),
        grid_spec=pltpu.PrefetchScalarGridSpec(
            num_scalar_prefetch=0,
            grid=(num_m_tiles, num_n_tiles, num_k_tiles),
            in_specs=[
                pl.BlockSpec((tile_m, tile_k), lambda i, j, k: (i, k)),   # x slab
                pl.BlockSpec((tile_k, tile_n), lambda i, j, k: (k, j)),   # weight slab
                pl.BlockSpec((1, tile_n), lambda i, j, k: (0, j)),        # bias slab
            ],
            out_specs=pl.BlockSpec((tile_m, tile_n), lambda i, j, k: (i, j)),
            scratch_shapes=[pltpu.VMEM((tile_m, tile_n), jnp.float32)],
        ),
        compiler_params=pltpu.CompilerParams(
            dimension_semantics=("parallel", "parallel", "arbitrary"),
            vmem_limit_bytes=vmem_limit),
        cost_estimate=cost,
    )(x2, w_eff, bias2)

    return out[:M, :d_out].reshape(size_out)


def _reference_forward(x, weight, bias, basis_b, basis_a,
                       randlora_lambda, randlora_gamma, lora_alpha, r):
    """Plain-JAX reference mirroring the torch forward (f32)."""
    d_in, d_out = weight.shape
    n = basis_b.shape[0]
    max_dim, min_dim = max(d_in, d_out), min(d_in, d_out)
    scaling = lora_alpha / r / math.sqrt(n)
    la = randlora_lambda[:, :, None] * basis_a[:n, :, :min_dim] * randlora_gamma[:, None, :]
    lb = jnp.transpose(basis_b[:n, :max_dim, :], (1, 0, 2)).reshape(max_dim, n * r)
    la = la.reshape(n * r, min_dim)
    w_eff = weight + (lb @ la).reshape(weight.shape) * scaling
    y = x.reshape(-1, d_in) @ w_eff + bias
    return y.reshape(x.shape[:-1] + (d_out,))


def _make_params(key, in_features, out_features, r, n):
    max_dim, min_dim = max(in_features, out_features), min(in_features, out_features)
    k1, k2, k3, k4, k5 = jax.random.split(key, 5)
    # __init__: weight ~ N(0, 0.02), bias = 0
    weight = 0.02 * jax.random.normal(k1, (out_features, in_features), jnp.float32)
    bias = jnp.zeros((in_features,), jnp.float32)
    basis_b = jax.random.normal(k2, (n, max_dim, r), jnp.float32)
    basis_a = jax.random.normal(k3, (n, r, min_dim), jnp.float32)
    # reset_parameters() would give lambda = 0 (LoRA contribution == 0);
    # use small random values so the LoRA path is numerically exercised.
    randlora_lambda = 0.1 * jax.random.normal(k4, (n, r), jnp.float32)
    randlora_gamma = (jnp.ones((n, min_dim), jnp.float32) / max(n, min_dim)
                      + 0.01 * jax.random.normal(k5, (n, min_dim), jnp.float32))
    return weight, bias, basis_b, basis_a, randlora_lambda, randlora_gamma


if __name__ == "__main__":
    key = jax.random.PRNGKey(0)
    key_a, key_b, kx1, kx2 = jax.random.split(key, 4)

    # ---- test 1: tiny module-consistent shapes (single tile everywhere) ----
    # ctor: in_features=32 (=nf, output width), out_features=64 (input width),
    # r=4, lora_alpha=4, basis n=3.
    in_f, out_f, r, lora_alpha, n = 32, 64, 4, 4, 3
    params = _make_params(key_a, in_f, out_f, r, n)
    batch, seq = 2, 8
    x = jax.random.normal(kx1, (batch, seq, out_f), jnp.float32)
    y_ref = _reference_forward(x, *params, lora_alpha, r)

    # exact f32 path
    y32 = conv_randlora_forward(x, *params, lora_alpha, r,
                                compute_dtype=jnp.float32)
    y32 = jax.block_until_ready(y32)
    assert y32.shape == (batch, seq, in_f)
    assert jnp.allclose(y32, y_ref, atol=1e-5, rtol=1e-5), "f32 mismatch vs reference"

    # default bf16 MXU path
    ybf = conv_randlora_forward(x, *params, lora_alpha, r)
    ybf = jax.block_until_ready(ybf)
    assert ybf.shape == (batch, seq, in_f)
    assert jnp.allclose(ybf, y_ref, atol=5e-2, rtol=5e-2), "bf16 mismatch vs reference"

    # ---- test 2: wider shapes exercising K-tiling + multi-N-tile path ----
    # ctor: in_features=384 (output width), out_features=1024 (input width).
    in_f2, out_f2 = 384, 1024
    params2 = _make_params(key_b, in_f2, out_f2, r, n)
    batch2, seq2 = 2, 128
    x2 = jax.random.normal(kx2, (batch2, seq2, out_f2), jnp.float32)
    y2_ref = _reference_forward(x2, *params2, lora_alpha, r)

    y2 = conv_randlora_forward(x2, *params2, lora_alpha, r)   # bf16 default
    y2 = jax.block_until_ready(y2)
    assert y2.shape == (batch2, seq2, in_f2)
    assert jnp.allclose(y2, y2_ref, atol=5e-2, rtol=5e-2), "K-tiled bf16 mismatch vs reference"

    print("KERNEL_OK")
</pallas_src>

<mosaic_0001>
module attributes {stable_mosaic.version = 11 : i64} {
  func.func @_addmm_kernel(%arg0: i32, %arg1: i32, %arg2: i32, %arg3: memref<16x64xf32, #tpu.memory_space<vmem>>, %arg4: memref<64x32xf32, #tpu.memory_space<vmem>>, %arg5: memref<1x32xf32, #tpu.memory_space<vmem>>, %arg6: memref<16x32xf32, #tpu.memory_space<vmem>>, %arg7: memref<16x32xf32, #tpu.memory_space<vmem>>) attributes {dimension_semantics = [#tpu.dimension_semantics<parallel>, #tpu.dimension_semantics<parallel>, #tpu.dimension_semantics<arbitrary>], iteration_bounds = array<i64: 1, 1, 1>, scalar_prefetch = 0 : i64, scratch_operands = 1 : i64, tpu.core_type = #tpu.core_type<tc>, window_params = [{transform_indices = @transform_0, window_bounds = array<i64: 16, 64>}, {transform_indices = @transform_1, window_bounds = array<i64: 64, 32>}, {transform_indices = @transform_2, window_bounds = array<i64: 1, 32>}, {transform_indices = @transform_3, window_bounds = array<i64: 16, 32>}]} {
    %c0_i32 = arith.constant 0 : i32
    %0 = arith.cmpi eq, %arg2, %c0_i32 : i32
    %1 = arith.extui %0 : i1 to i32
    %c0_i32_0 = arith.constant 0 : i32
    %2 = arith.cmpi ne, %1, %c0_i32_0 : i32
    scf.if %2 {
      %cst_10 = arith.constant 0.000000e+00 : f32
      %12 = vector.broadcast %cst_10 : f32 to vector<16x32xf32>
      %c0_11 = arith.constant 0 : index
      %c0_12 = arith.constant 0 : index
      %13 = vector.load %arg7[%c0_11, %c0_12] : memref<16x32xf32, #tpu.memory_space<vmem>>, vector<16x32xf32>
      tpu.vector_store %arg7[%c0_11, %c0_12], %12 {strides = array<i32>} : memref<16x32xf32, #tpu.memory_space<vmem>>, vector<16x32xf32>,
    } else {
    }
    %c0 = arith.constant 0 : index
    %c0_1 = arith.constant 0 : index
    %3 = vector.load %arg7[%c0, %c0_1] : memref<16x32xf32, #tpu.memory_space<vmem>>, vector<16x32xf32>
    %c0_2 = arith.constant 0 : index
    %c0_3 = arith.constant 0 : index
    %4 = vector.load %arg3[%c0_2, %c0_3] : memref<16x64xf32, #tpu.memory_space<vmem>>, vector<16x64xf32>
    %c0_4 = arith.constant 0 : index
    %c0_5 = arith.constant 0 : index
    %5 = vector.load %arg4[%c0_4, %c0_5] : memref<64x32xf32, #tpu.memory_space<vmem>>, vector<64x32xf32>
    %cst = arith.constant dense<0.000000e+00> : vector<16x32xf32>
    %6 = tpu.matmul %4, %5, %cst {dimension_numbers = #tpu.dot_dimension_numbers<[1], [0], [0], [1], [0, 0, 1, 1], [], []>} : vector<16x64xf32>, vector<64x32xf32>, vector<16x32xf32> -> vector<16x32xf32>
    %7 = arith.addf %3, %6 : vector<16x32xf32>
    %c0_6 = arith.constant 0 : index
    %c0_7 = arith.constant 0 : index
    %8 = vector.load %arg7[%c0_6, %c0_7] : memref<16x32xf32, #tpu.memory_space<vmem>>, vector<16x32xf32>
    tpu.vector_store %arg7[%c0_6, %c0_7], %7 {strides = array<i32>} : memref<16x32xf32, #tpu.memory_space<vmem>>, vector<16x32xf32>,
    %c0_i32_8 = arith.constant 0 : i32
    %9 = arith.cmpi eq, %arg2, %c0_i32_8 : i32
    %10 = arith.extui %9 : i1 to i32
    %c0_i32_9 = arith.constant 0 : i32
    %11 = arith.cmpi ne, %10, %c0_i32_9 : i32
    scf.if %11 {
      %c0_10 = arith.constant 0 : index
      %c0_11 = arith.constant 0 : index
      %12 = vector.load %arg7[%c0_10, %c0_11] : memref<16x32xf32, #tpu.memory_space<vmem>>, vector<16x32xf32>
      %c0_12 = arith.constant 0 : index
      %c0_13 = arith.constant 0 : index
      %13 = vector.load %arg5[%c0_12, %c0_13] : memref<1x32xf32, #tpu.memory_space<vmem>>, vector<1x32xf32>
      %14 = vector.broadcast %13 : vector<1x32xf32> to vector<16x32xf32>
      %15 = arith.addf %12, %14 : vector<16x32xf32>
      %c0_14 = arith.constant 0 : index
      %c0_15 = arith.constant 0 : index
      %16 = vector.load %arg6[%c0_14, %c0_15] : memref<16x32xf32, #tpu.memory_space<vmem>>, vector<16x32xf32>
      tpu.vector_store %arg6[%c0_14, %c0_15], %15 {strides = array<i32>} : memref<16x32xf32, #tpu.memory_space<vmem>>, vector<16x32xf32>,
    } else {
    }
    return
  }
  func.func @transform_0(%arg0: i32, %arg1: i32, %arg2: i32) -> (i32, i32) {
    %c0_i32 = arith.constant 0 : i32
    return %arg0, %arg2 : i32, i32
  }
  func.func @transform_1(%arg0: i32, %arg1: i32, %arg2: i32) -> (i32, i32) {
    %c0_i32 = arith.constant 0 : i32
    return %arg2, %arg1 : i32, i32
  }
  func.func @transform_2(%arg0: i32, %arg1: i32, %arg2: i32) -> (i32, i32) {
    %c0_i32 = arith.constant 0 : i32
    %c0_i32_0 = arith.constant 0 : i32
    return %c0_i32, %arg1 : i32, i32
  }
  func.func @transform_3(%arg0: i32, %arg1: i32, %arg2: i32) -> (i32, i32) {
    %c0_i32 = arith.constant 0 : i32
    return %arg0, %arg1 : i32, i32
  }
}

</mosaic_0001>

<llo_original>
// kernel: tpu_custom_call.1
$region0: #{tpu_custom_call.1}
  #allocation0 [shape = 'u32[]', space=smem, size = 0x4, offset = 0x4, fixed_abs, tag = 'smem constant byte address 0x4 - core index']
  #allocation1 [shape = 'u32[72,128]{1,0:T(1,128)}', space=vmem, size = 0x9000, scoped, tag = 'internal scratch']
  #allocation2 [shape = 'f32[16,32]{1,0:T(8,128)}', space=vmem, size = 0x2000, scoped, tag = 'scratch operand']
  %s0 = inlined_call_operand.vmem [shape: f32[16,64], index: 0, kind: input, shape index: {}]
  %s1 = inlined_call_operand.vmem [shape: f32[64,32], index: 1, kind: input, shape index: {}]
  %s2 = inlined_call_operand.vmem [shape: f32[1,32], index: 2, kind: input, shape index: {}]
  %s3 = inlined_call_operand.hbm [shape: f32[16,32], index: 3, kind: output, shape index: {}]
  %s4 = sld [smem:[#allocation0]]
  $region30: #{tpu_custom_call.1} parent=0
    _
  %s6 = ssub.s32 1, %s4
  %s7 = scalar_select 0, %s6, %s4
  $region1: #{tpu_custom_call.1} parent=0
    #allocation3 [shape = 'u8[8192]{0}', space=vmem, size = 0x2000, scoped, tag = 'output window, operand 0, single buffered']
    #allocation4 [shape = 's32[1]{0}', space=sflag, size = 0x4, scoped, tag = 'scoped memory for tpu_custom_call.1']
    %8 = vsyncpa [#allocation4], 0
    // Predicated region
    $region2: #{tpu_custom_call.1} parent=1 // pred_check
      _
    $region3: #{tpu_custom_call.1} parent=1 // pred_check_branch
      %10 = sbr.rel (0) target = $region5
    $region4: #{tpu_custom_call.1} parent=1 // pred_region
      _
    $region5: #{tpu_custom_call.1} parent=1 // pred_fallthru
      _
    // Predicated region
    $region6: #{tpu_custom_call.1} parent=1 // pred_check
      _
    $region7: #{tpu_custom_call.1} parent=1 // pred_check_branch
      %12 = sbr.rel (0) target = $region9
    $region8: #{tpu_custom_call.1} parent=1 // pred_region
      _
    $region9: #{tpu_custom_call.1} parent=1 // pred_fallthru
      _
    // Predicated region
    $region10: #{tpu_custom_call.1} parent=1 // pred_check
      _
    $region11: #{tpu_custom_call.1} parent=1 // pred_check_branch
      %14 = sbr.rel (0) target = $region13
    $region12: #{tpu_custom_call.1} parent=1 // pred_region
      _
    $region13: #{tpu_custom_call.1} parent=1 // pred_fallthru
      _
    %p15 = scmp.eq.s32.totalorder 0, 0
    // Predicated region
    $region14: #{tpu_custom_call.1} parent=1 // pred_check
      %p16 = pneg %p15
    $region15: #{tpu_custom_call.1} parent=1 // pred_check_branch
      %18 = sbr.rel (%p16) target = $region17
    $region16: #{tpu_custom_call.1} parent=1 // pred_region
      %vm19 = vcmask 261120
      %20 = vst.msk [vmem:[#allocation2] sm:$0xff] %vm19, 0.0
      %21 = vst.msk [vmem:[#allocation2 + $0x8] sm:$0xff] %vm19, 0.0
    $region17: #{tpu_custom_call.1} parent=1 // pred_fallthru
      _
    %v22 = vld [vmem:[#allocation2] sm:$0xff]
    %v23 = vld [vmem:[#allocation2 + $0x8] sm:$0xff]
    %v24 = vld [vmem:[%s0] sm:$0xff]
    %v25 = vld [vmem:[%s0 + $0x8] sm:$0xff]
    %v26 = vld [vmem:[%s1] sm:$0xff]
    %v27 = vld [vmem:[%s1 + $0x8] sm:$0xff]
    %v28 = vld [vmem:[%s1 + $0x10] sm:$0xff]
    %v29 = vld [vmem:[%s1 + $0x18] sm:$0xff]
    %v30 = vld [vmem:[%s1 + $0x20] sm:$0xff]
    %v31 = vld [vmem:[%s1 + $0x28] sm:$0xff]
    %v32 = vld [vmem:[%s1 + $0x30] sm:$0xff]
    %v33 = vld [vmem:[%s1 + $0x38] sm:$0xff]
    %vm34 = vcmask 523264
    %v36 = vsel %vm34, %v24, 0
    %v39 = vsel %vm34, %v25, 0
    %41 = vmatpush.msra.mxu0 0.0
    %42 = vmatpush.msra.mxu0 0.0
    %43 = vmatpush.msra.mxu0 0.0
    %44 = vmatpush.msra.mxu0 0.0
    %45 = vmatpush.msra.mxu0 0.0
    %46 = vmatpush.msra.mxu0 0.0
    %47 = vmatpush.msra.mxu0 0.0
    %48 = vmatpush.msra.mxu0 0.0
    %49 = vmatpush.msra.mxu0 %v33
    %50 = vmatpush.msra.mxu0 %v32
    %51 = vmatpush.msra.mxu0 %v31
    %52 = vmatpush.msra.mxu0 %v30
    %53 = vmatpush.msra.mxu0 %v29
    %54 = vmatpush.msra.mxu0 %v28
    %55 = vmatpush.msra.mxu0 %v27
    %56 = vmatpush.msra.mxu0 %v26
    %57 = vmatmul.f32.gmra.mxu0 %v36
    %v58 = vpop.f32.mrf.mxu0
    %v59 = vadd.f32 0.0, %v58
    %60 = vmatmul.f32.gmra.mxu0 %v39
    %v61 = vpop.f32.mrf.mxu0
    %v62 = vadd.f32 0.0, %v61
    %63 = vdwg.mxu0
    %v64 = vadd.f32 %v22, %v59
    %v65 = vadd.f32 %v23, %v62
    %vm66 = vcmask 261120
    %67 = vst.msk [vmem:[#allocation2] sm:$0xff] %vm66, %v64
    %68 = vst.msk [vmem:[#allocation2 + $0x8] sm:$0xff] %vm66, %v65
    // Predicated region
    $region18: #{tpu_custom_call.1} parent=1 // pred_check
      %p69 = pneg %p15
    $region19: #{tpu_custom_call.1} parent=1 // pred_check_branch
      %71 = sbr.rel (%p69) target = $region21
    $region20: #{tpu_custom_call.1} parent=1 // pred_region
      %v72 = vld [vmem:[#allocation2] sm:$0xff]
      %v73 = vld [vmem:[#allocation2 + $0x8] sm:$0xff]
      %v74 = vld [vmem:[%s2] sm:$0x1]
      %v76 = vperm.slane %v74, 0
      %v78 = vadd.f32 %v72, %v76
      %v79 = vadd.f32 %v73, %v76
      %80 = vst.msk [vmem:[#allocation3] sm:$0xff] %vm66, %v78
      %81 = vst.msk [vmem:[#allocation3 + $0x8] sm:$0xff] %vm66, %v79
    $region21: #{tpu_custom_call.1} parent=1 // pred_fallthru
      _
    // Predicated region
    $region22: #{tpu_custom_call.1} parent=1 // pred_check
      _
    $region23: #{tpu_custom_call.1} parent=1 // pred_check_branch
      %83 = sbr.rel (0) target = $region25
    $region24: #{tpu_custom_call.1} parent=1 // pred_region
      %85 = vsyncadd [#allocation4], 0
      %s86 = sshll.u32 [#allocation3], 4
      %s87 = int_to_ptr.vmem [resolvable:$true] %s86
      %s88 = sshll.u32 %s3, 4
      %s89 = int_to_ptr.hbm [resolvable:$true] %s88
      %94 = dma.vmem_to_hbm [thread:$0]  %s87, 256, %s89, [#allocation4], 128, 128, 8
    $region25: #{tpu_custom_call.1} parent=1 // pred_fallthru
      _
    // Predicated region
    $region26: #{tpu_custom_call.1} parent=1 // pred_check
      _
    $region27: #{tpu_custom_call.1} parent=1 // pred_check_branch
      %96 = sbr.rel (0) target = $region29
    $region28: #{tpu_custom_call.1} parent=1 // pred_region
      %98 = dma.done [#allocation4], 256
    $region29: #{tpu_custom_call.1} parent=1 // pred_fallthru
      _
    %99 = vsyncpa [#allocation4], 1

</llo_original>
